<compile_context>
chip_gen: v7x
topology: tpu7x:2x2x1
jax: 0.10.0
libtpu: 0.0.40
codegen_flags: <defaults>
</compile_context>

<pallas_src>
import jax
import jax.numpy as jnp
from jax.experimental import pallas as pl
from jax.experimental.pallas import tpu as pltpu

_LANE = 128


def _cdiv(a, b):
    return -(-a // b)


def _choose_tile(dim, target, granule=_LANE):
    """Pick a layout-friendly tile size.

    dim <= target            -> full dimension (always a legal block)
    dim % target == 0        -> target
    else                     -> largest granule-multiple <= target dividing dim
    else                     -> target (wrapper pads the array up to a multiple;
                                never a raw full-dim block for big ragged shapes)
    """
    if dim <= target:
        return dim
    if dim % target == 0:
        return target
    t = (target // granule) * granule
    while t >= granule:
        if dim % t == 0:
            return t
        t -= granule
    return target


def _pad2d(x, rows, cols):
    r, c = x.shape
    if r == rows and c == cols:
        return x
    return jnp.pad(x, ((0, rows - r), (0, cols - c)))


def _vmem_capacity_bytes():
    try:
        return int(pltpu.get_tpu_info().vmem_capacity_bytes)
    except Exception:
        return 64 * 1024 * 1024  # conservative default (v7x per-TensorCore)


def _addmm_kernel_inplace(inp_ref, a_ref, b_ref, out_ref):
    # Output block index_map ignores k -> the block stays resident in VMEM
    # across the whole reduction axis; accumulate into it directly.
    @pl.when(pl.program_id(2) == 0)
    def _init():
        out_ref[...] = inp_ref[...].astype(out_ref.dtype)

    out_ref[...] += jnp.dot(
        a_ref[...], b_ref[...], preferred_element_type=jnp.float32
    )


def _addmm_kernel_scratch(inp_ref, a_ref, b_ref, out_ref, acc_ref):
    # Fallback for non-f32 outputs: f32 accumulator scratch, single epilogue cast.
    k = pl.program_id(2)

    @pl.when(k == 0)
    def _init():
        acc_ref[...] = inp_ref[...].astype(jnp.float32)

    acc_ref[...] += jnp.dot(
        a_ref[...], b_ref[...], preferred_element_type=jnp.float32
    )

    @pl.when(k == pl.num_programs(2) - 1)
    def _finalize():
        out_ref[...] = acc_ref[...].astype(out_ref.dtype)


def addmm(inp, batch1, batch2, *, tm=1024, tn=1024, tk=1024,
          cast_operands_to_bf16=False):
    M, K = batch1.shape
    K2, N = batch2.shape
    assert K == K2, f"inner dims must match: {K} vs {K2}"
    assert inp.shape == (M, N), f"bias shape {inp.shape} != {(M, N)}"

    if cast_operands_to_bf16:
        # Accuracy/perf tradeoff: bf16 MXU rate is 4-8x f32 and halves A/B
        # HBM traffic; accumulation stays in f32. Off by default.
        batch1 = batch1.astype(jnp.bfloat16)
        batch2 = batch2.astype(jnp.bfloat16)

    out_dtype = inp.dtype

    tm = _choose_tile(M, tm)
    tn = _choose_tile(N, tn)
    tk = _choose_tile(K, tk)

    # Megacore occupancy (v7x has 2 TensorCores): prefer >= 2 (i, j) tiles.
    while _cdiv(M, tm) * _cdiv(N, tn) < 2:
        if tn >= 512 and tn % 256 == 0:
            tn //= 2
        elif tm >= 512 and tm % 256 == 0:
            tm //= 2
        else:
            break

    Mp = _cdiv(M, tm) * tm
    Np = _cdiv(N, tn) * tn
    Kp = _cdiv(K, tk) * tk
    # TODO(synk): for production shapes, pad on the caller side so the zero
    # pads below are not re-materialized on every invocation.
    a = _pad2d(batch1, Mp, Kp)
    b = _pad2d(batch2, Kp, Np)
    bias = _pad2d(inp, Mp, Np)

    grid = (Mp // tm, Np // tn, Kp // tk)

    in_specs = [
        # bias: depends only on (i, j) -> resident across the k axis.
        pl.BlockSpec((tm, tn), lambda i, j, k: (i, j)),
        pl.BlockSpec((tm, tk), lambda i, j, k: (i, k)),
        pl.BlockSpec((tk, tn), lambda i, j, k: (k, j)),
    ]
    out_spec = pl.BlockSpec((tm, tn), lambda i, j, k: (i, j))

    if out_dtype == jnp.float32:
        kernel = _addmm_kernel_inplace
        scratch_shapes = []
        acc_bytes = 0
    else:
        kernel = _addmm_kernel_scratch
        scratch_shapes = [pltpu.VMEM((tm, tn), jnp.float32)]
        acc_bytes = tm * tn * 4

    esz = lambda d: jnp.dtype(d).itemsize
    # Double-buffered input/output blocks (+ accumulator scratch) + headroom,
    # capped at 7/8 of this generation's physical VMEM.
    need = 2 * (tm * tk * esz(a.dtype) + tk * tn * esz(b.dtype)
                + tm * tn * esz(bias.dtype) + tm * tn * esz(out_dtype))
    need += acc_bytes
    vmem_limit_bytes = min(max(need + (8 << 20), 32 << 20),
                           (_vmem_capacity_bytes() * 7) // 8)

    cost = pl.CostEstimate(
        flops=2 * M * N * K,
        transcendentals=0,
        bytes_accessed=(M * K * esz(a.dtype) + K * N * esz(b.dtype)
                        + M * N * esz(bias.dtype) + M * N * esz(out_dtype)),
    )

    out = pl.pallas_call(
        kernel,
        out_shape=jax.ShapeDtypeStruct((Mp, Np), out_dtype),
        grid_spec=pltpu.PrefetchScalarGridSpec(
            num_scalar_prefetch=0,
            grid=grid,
            in_specs=in_specs,
            out_specs=out_spec,
            scratch_shapes=scratch_shapes,
        ),
        compiler_params=pltpu.CompilerParams(
            dimension_semantics=("parallel", "parallel", "arbitrary"),
            vmem_limit_bytes=vmem_limit_bytes,
        ),
        cost_estimate=cost,
    )(bias, a, b)

    if (Mp, Np) != (M, N):
        out = out[:M, :N]
    return out


def reference(inp, batch1, batch2):
    return jnp.dot(batch1, batch2) + inp


if __name__ == "__main__":
    key = jax.random.PRNGKey(0)

    # Case 1: small shapes, single grid step with full-dim blocks.
    k1, k2, k3 = jax.random.split(key, 3)
    M, K, N = 8, 32, 128
    batch1 = jax.random.normal(k1, (M, K), dtype=jnp.float32)
    batch2 = jax.random.normal(k2, (K, N), dtype=jnp.float32)
    inp = jax.random.normal(k3, (M, N), dtype=jnp.float32)

    out = addmm(inp, batch1, batch2)
    jax.block_until_ready(out)
    ref = reference(inp, batch1, batch2)
    assert out.shape == (M, N)
    assert jnp.allclose(out, ref, atol=1e-5, rtol=1e-5)

    # Case 2: multi-step (i, j, k) grid, in-place accumulation across k.
    # Tiles are layout-legal (tk multiple of 128).
    k4, k5, k6 = jax.random.split(jax.random.PRNGKey(1), 3)
    M2, K2_, N2 = 16, 256, 256
    b1 = jax.random.normal(k4, (M2, K2_), dtype=jnp.float32)
    b2 = jax.random.normal(k5, (K2_, N2), dtype=jnp.float32)
    bias2 = jax.random.normal(k6, (M2, N2), dtype=jnp.float32)

    out2 = addmm(bias2, b1, b2, tm=8, tn=128, tk=128)
    jax.block_until_ready(out2)
    ref2 = reference(bias2, b1, b2)
    assert out2.shape == (M2, N2)
    assert jnp.allclose(out2, ref2, atol=1e-3, rtol=1e-3)

    # Case 3: ragged shapes exercising the pad-to-tile-multiple path.
    k7, k8, k9 = jax.random.split(jax.random.PRNGKey(2), 3)
    M3, K3, N3 = 20, 96, 200
    c1 = jax.random.normal(k7, (M3, K3), dtype=jnp.float32)
    c2 = jax.random.normal(k8, (K3, N3), dtype=jnp.float32)
    bias3 = jax.random.normal(k9, (M3, N3), dtype=jnp.float32)

    out3 = addmm(bias3, c1, c2, tm=8, tn=128, tk=128)
    jax.block_until_ready(out3)
    ref3 = reference(bias3, c1, c2)
    assert out3.shape == (M3, N3)
    assert jnp.allclose(out3, ref3, atol=1e-3, rtol=1e-3)

    print("KERNEL_OK")
</pallas_src>

<mosaic_0001>
module attributes {stable_mosaic.version = 11 : i64} {
  func.func @_addmm_kernel_inplace(%arg0: i32, %arg1: i32, %arg2: i32, %arg3: memref<8x128xf32, #tpu.memory_space<vmem>>, %arg4: memref<8x32xf32, #tpu.memory_space<vmem>>, %arg5: memref<32x128xf32, #tpu.memory_space<vmem>>, %arg6: memref<8x128xf32, #tpu.memory_space<vmem>>) attributes {dimension_semantics = [#tpu.dimension_semantics<parallel>, #tpu.dimension_semantics<parallel>, #tpu.dimension_semantics<arbitrary>], iteration_bounds = array<i64: 1, 1, 1>, scalar_prefetch = 0 : i64, scratch_operands = 0 : i64, tpu.core_type = #tpu.core_type<tc>, window_params = [{transform_indices = @transform_0, window_bounds = array<i64: 8, 128>}, {transform_indices = @transform_1, window_bounds = array<i64: 8, 32>}, {transform_indices = @transform_2, window_bounds = array<i64: 32, 128>}, {transform_indices = @transform_3, window_bounds = array<i64: 8, 128>}]} {
    %c0_i32 = arith.constant 0 : i32
    %0 = arith.cmpi eq, %arg2, %c0_i32 : i32
    %1 = arith.extui %0 : i1 to i32
    %c0_i32_0 = arith.constant 0 : i32
    %2 = arith.cmpi ne, %1, %c0_i32_0 : i32
    scf.if %2 {
      %c0_8 = arith.constant 0 : index
      %c0_9 = arith.constant 0 : index
      %9 = vector.load %arg3[%c0_8, %c0_9] : memref<8x128xf32, #tpu.memory_space<vmem>>, vector<8x128xf32>
      %c0_10 = arith.constant 0 : index
      %c0_11 = arith.constant 0 : index
      %10 = vector.load %arg6[%c0_10, %c0_11] : memref<8x128xf32, #tpu.memory_space<vmem>>, vector<8x128xf32>
      tpu.vector_store %arg6[%c0_10, %c0_11], %9 {strides = array<i32>} : memref<8x128xf32, #tpu.memory_space<vmem>>, vector<8x128xf32>,
    } else {
    }
    %c0 = arith.constant 0 : index
    %c0_1 = arith.constant 0 : index
    %3 = vector.load %arg6[%c0, %c0_1] : memref<8x128xf32, #tpu.memory_space<vmem>>, vector<8x128xf32>
    %c0_2 = arith.constant 0 : index
    %c0_3 = arith.constant 0 : index
    %4 = vector.load %arg4[%c0_2, %c0_3] : memref<8x32xf32, #tpu.memory_space<vmem>>, vector<8x32xf32>
    %c0_4 = arith.constant 0 : index
    %c0_5 = arith.constant 0 : index
    %5 = vector.load %arg5[%c0_4, %c0_5] : memref<32x128xf32, #tpu.memory_space<vmem>>, vector<32x128xf32>
    %cst = arith.constant dense<0.000000e+00> : vector<8x128xf32>
    %6 = tpu.matmul %4, %5, %cst {dimension_numbers = #tpu.dot_dimension_numbers<[1], [0], [0], [1], [0, 0, 1, 1], [], []>} : vector<8x32xf32>, vector<32x128xf32>, vector<8x128xf32> -> vector<8x128xf32>
    %7 = arith.addf %3, %6 : vector<8x128xf32>
    %c0_6 = arith.constant 0 : index
    %c0_7 = arith.constant 0 : index
    %8 = vector.load %arg6[%c0_6, %c0_7] : memref<8x128xf32, #tpu.memory_space<vmem>>, vector<8x128xf32>
    tpu.vector_store %arg6[%c0_6, %c0_7], %7 {strides = array<i32>} : memref<8x128xf32, #tpu.memory_space<vmem>>, vector<8x128xf32>,
    return
  }
  func.func @transform_0(%arg0: i32, %arg1: i32, %arg2: i32) -> (i32, i32) {
    %c0_i32 = arith.constant 0 : i32
    return %arg0, %arg1 : i32, i32
  }
  func.func @transform_1(%arg0: i32, %arg1: i32, %arg2: i32) -> (i32, i32) {
    %c0_i32 = arith.constant 0 : i32
    return %arg0, %arg2 : i32, i32
  }
  func.func @transform_2(%arg0: i32, %arg1: i32, %arg2: i32) -> (i32, i32) {
    %c0_i32 = arith.constant 0 : i32
    return %arg2, %arg1 : i32, i32
  }
  func.func @transform_3(%arg0: i32, %arg1: i32, %arg2: i32) -> (i32, i32) {
    %c0_i32 = arith.constant 0 : i32
    return %arg0, %arg1 : i32, i32
  }
}

</mosaic_0001>

<llo_original>
// kernel: tpu_custom_call.1
$region0: #{tpu_custom_call.1}
  #allocation0 [shape = 'u32[]', space=smem, size = 0x4, offset = 0x4, fixed_abs, tag = 'smem constant byte address 0x4 - core index']
  #allocation1 [shape = 'u32[144,128]{1,0:T(1,128)}', space=vmem, size = 0x12000, scoped, tag = 'internal scratch']
  %s0 = inlined_call_operand.hbm [shape: f32[8,128], index: 0, kind: input, shape index: {}]
  %s1 = inlined_call_operand.hbm [shape: f32[8,32], index: 1, kind: input, shape index: {}]
  %s2 = inlined_call_operand.hbm [shape: f32[32,128], index: 2, kind: input, shape index: {}]
  %s3 = inlined_call_operand.hbm [shape: f32[8,128], index: 3, kind: output, shape index: {}]
  %s4 = sld [smem:[#allocation0]]
  $region38: #{tpu_custom_call.1} parent=0
    _
  %s6 = ssub.s32 1, %s4
  %s7 = scalar_select 0, %s6, %s4
  $region1: #{tpu_custom_call.1} parent=0
    #allocation2 [shape = 'u8[4096]{0}', space=vmem, size = 0x1000, scoped, tag = 'input window, operand 0, single buffered']
    #allocation3 [shape = 's32[1]{0}', space=sflag, size = 0x4, scoped, tag = 'scoped memory for tpu_custom_call.1']
    #allocation4 [shape = 's32[1]{0}', space=sflag, size = 0x4, scoped, tag = 'scoped memory for tpu_custom_call.1']
    #allocation5 [shape = 'u8[4096]{0}', space=vmem, size = 0x1000, scoped, tag = 'input window, operand 1, single buffered']
    #allocation6 [shape = 's32[1]{0}', space=sflag, size = 0x4, scoped, tag = 'scoped memory for tpu_custom_call.1']
    #allocation7 [shape = 'u8[16384]{0}', space=vmem, size = 0x4000, scoped, tag = 'input window, operand 2, single buffered']
    #allocation8 [shape = 'u8[4096]{0}', space=vmem, size = 0x1000, scoped, tag = 'output window, operand 0, single buffered']
    %8 = vsyncpa [#allocation3], 0
    %9 = vsyncpa [#allocation6], 0
    %10 = vsyncpa [#allocation4], 0
    // Predicated region
    $region2: #{tpu_custom_call.1} parent=1 // pred_check
      _
    $region3: #{tpu_custom_call.1} parent=1 // pred_check_branch
      %12 = sbr.rel (0) target = $region5
    $region4: #{tpu_custom_call.1} parent=1 // pred_region
      %s14 = ssub.s32 128, 128
      %15 = vsyncadd [#allocation3], %s14
      %s17 = sshll.u32 [#allocation2], 4
      %s18 = int_to_ptr.vmem [resolvable:$true] %s17
      %20 = dma.hbm_to_vmem [thread:$0]  %s0, 128, %s18, [#allocation3]
    $region5: #{tpu_custom_call.1} parent=1 // pred_fallthru
      _
    // Predicated region
    $region6: #{tpu_custom_call.1} parent=1 // pred_check
      _
    $region7: #{tpu_custom_call.1} parent=1 // pred_check_branch
      %22 = sbr.rel (0) target = $region9
    $region8: #{tpu_custom_call.1} parent=1 // pred_region
      %s24 = ssub.s32 128, 128
      %25 = vsyncadd [#allocation6], %s24
      %s27 = sshll.u32 [#allocation5], 4
      %s28 = int_to_ptr.vmem [resolvable:$true] %s27
      %30 = dma.hbm_to_vmem [thread:$0]  %s1, 128, %s28, [#allocation6]
    $region9: #{tpu_custom_call.1} parent=1 // pred_fallthru
      _
    // Predicated region
    $region10: #{tpu_custom_call.1} parent=1 // pred_check
      _
    $region11: #{tpu_custom_call.1} parent=1 // pred_check_branch
      %32 = sbr.rel (0) target = $region13
    $region12: #{tpu_custom_call.1} parent=1 // pred_region
      %s34 = ssub.s32 512, 512
      %35 = vsyncadd [#allocation6], %s34
      %s36 = sshll.u32 [#allocation7], 4
      %s37 = int_to_ptr.vmem [resolvable:$true] %s36
      %42 = dma.hbm_to_vmem [thread:$0]  %s2, 512, %s37, [#allocation6], 128, 128, 8
    $region13: #{tpu_custom_call.1} parent=1 // pred_fallthru
      _
    // Predicated region
    $region14: #{tpu_custom_call.1} parent=1 // pred_check
      _
    $region15: #{tpu_custom_call.1} parent=1 // pred_check_branch
      %44 = sbr.rel (0) target = $region17
    $region16: #{tpu_custom_call.1} parent=1 // pred_region
      %45 = dma.done [#allocation3], 128
    $region17: #{tpu_custom_call.1} parent=1 // pred_fallthru
      _
    // Predicated region
    $region18: #{tpu_custom_call.1} parent=1 // pred_check
      _
    $region19: #{tpu_custom_call.1} parent=1 // pred_check_branch
      %47 = sbr.rel (0) target = $region21
    $region20: #{tpu_custom_call.1} parent=1 // pred_region
      %48 = dma.done [#allocation6], 128
    $region21: #{tpu_custom_call.1} parent=1 // pred_fallthru
      _
    // Predicated region
    $region22: #{tpu_custom_call.1} parent=1 // pred_check
      _
    $region23: #{tpu_custom_call.1} parent=1 // pred_check_branch
      %50 = sbr.rel (0) target = $region25
    $region24: #{tpu_custom_call.1} parent=1 // pred_region
      %51 = dma.done [#allocation6], 512
    $region25: #{tpu_custom_call.1} parent=1 // pred_fallthru
      _
    %p52 = scmp.eq.s32.totalorder 0, 0
    // Predicated region
    $region26: #{tpu_custom_call.1} parent=1 // pred_check
      %p53 = pneg %p52
    $region27: #{tpu_custom_call.1} parent=1 // pred_check_branch
      %55 = sbr.rel (%p53) target = $region29
    $region28: #{tpu_custom_call.1} parent=1 // pred_region
      %v56 = vld [vmem:[#allocation2] sm:$0xff]
      %57 = vst [vmem:[#allocation8] sm:$0xff] %v56
    $region29: #{tpu_custom_call.1} parent=1 // pred_fallthru
      _
    %v58 = vld [vmem:[#allocation8] sm:$0xff]
    %v59 = vld [vmem:[#allocation5] sm:$0xff]
    %v60 = vld [vmem:[#allocation7] sm:$0xff]
    %v61 = vld [vmem:[#allocation7 + $0x8] sm:$0xff]
    %v62 = vld [vmem:[#allocation7 + $0x10] sm:$0xff]
    %v63 = vld [vmem:[#allocation7 + $0x18] sm:$0xff]
    %vm64 = vcmask 261120
    %v66 = vsel %vm64, %v59, 0
    %68 = vmatprep.subr.mxu0 0.0
    %69 = vmatpush1.msra.mxu0 %v60
    %70 = vmatprep.subr.mxu0 0.0
    %71 = vmatpush1.msra.mxu0 %v61
    %72 = vmatprep.subr.mxu0 0.0
    %73 = vmatpush1.msra.mxu0 %v62
    %74 = vmatprep.subr.mxu0 0.0
    %75 = vmatpush1.msra.mxu0 %v63
    %76 = vmatprep.subr.mxu0 0.0
    %77 = vmatpush1.msra.mxu0 0.0
    %78 = vmatprep.subr.mxu0 0.0
    %79 = vmatpush1.msra.mxu0 0.0
    %80 = vmatprep.subr.mxu0 0.0
    %81 = vmatpush1.msra.mxu0 0.0
    %82 = vmatprep.subr.mxu0 0.0
    %83 = vmatpush1.msra.mxu0 0.0
    %84 = vmatprep.subr.mxu0 0.0
    %85 = vmatpush1.msra.mxu0 0.0
    %86 = vmatprep.subr.mxu0 0.0
    %87 = vmatpush1.msra.mxu0 0.0
    %88 = vmatprep.subr.mxu0 0.0
    %89 = vmatpush1.msra.mxu0 0.0
    %90 = vmatprep.subr.mxu0 0.0
    %91 = vmatpush1.msra.mxu0 0.0
    %92 = vmatprep.subr.mxu0 0.0
    %93 = vmatpush1.msra.mxu0 0.0
    %94 = vmatprep.subr.mxu0 0.0
    %95 = vmatpush1.msra.mxu0 0.0
    %96 = vmatprep.subr.mxu0 0.0
    %97 = vmatpush1.msra.mxu0 0.0
    %98 = vmatprep.subr.mxu0 0.0
    %99 = vmatpush1.msra.mxu0 0.0
    %100 = vmatprep.subr.mxu0 0.0
    %101 = vmatpush1.msra.mxu0 0.0
    %102 = vmatprep.subr.mxu0 0.0
    %103 = vmatpush1.msra.mxu0 0.0
    %104 = vmatprep.subr.mxu0 0.0
    %105 = vmatpush1.msra.mxu0 0.0
    %106 = vmatprep.subr.mxu0 0.0
    %107 = vmatpush1.msra.mxu0 0.0
    %108 = vmatprep.subr.mxu0 0.0
    %109 = vmatpush1.msra.mxu0 0.0
    %110 = vmatprep.subr.mxu0 0.0
    %111 = vmatpush1.msra.mxu0 0.0
    %112 = vmatprep.subr.mxu0 0.0
    %113 = vmatpush1.msra.mxu0 0.0
    %114 = vmatprep.subr.mxu0 0.0
    %115 = vmatpush1.msra.mxu0 0.0
    %116 = vmatprep.subr.mxu0 0.0
    %117 = vmatpush1.msra.mxu0 0.0
    %118 = vmatprep.subr.mxu0 0.0
    %119 = vmatpush1.msra.mxu0 0.0
    %120 = vmatprep.subr.mxu0 0.0
    %121 = vmatpush1.msra.mxu0 0.0
    %122 = vmatprep.subr.mxu0 0.0
    %123 = vmatpush1.msra.mxu0 0.0
    %124 = vmatprep.subr.mxu0 0.0
    %125 = vmatpush1.msra.mxu0 0.0
    %126 = vmatprep.subr.mxu0 0.0
    %127 = vmatpush1.msra.mxu0 0.0
    %128 = vmatprep.subr.mxu0 0.0
    %129 = vmatpush1.msra.mxu0 0.0
    %130 = vmatprep.subr.mxu0 0.0
    %131 = vmatpush1.msra.mxu0 0.0
    %132 = vmatprep.mubr.f32.mxu0 0.0
    %133 = vmatmul.mubr.f32.gmra.mrb[0].mxu0 %v66
    %v134 = vpop.f32.mrb[0].mxu0
    %v135 = vadd.f32 0.0, %v134
    %v136 = vpop.f32.mrb[0].mxu0
    %137 = vdwg.mxu0
    %v138 = vadd.f32 %v58, %v135
    %139 = vst [vmem:[#allocation8] sm:$0xff] %v138
    // Predicated region
    $region30: #{tpu_custom_call.1} parent=1 // pred_check
      _
    $region31: #{tpu_custom_call.1} parent=1 // pred_check_branch
      %141 = sbr.rel (0) target = $region33
    $region32: #{tpu_custom_call.1} parent=1 // pred_region
      %s143 = ssub.s32 128, 128
      %144 = vsyncadd [#allocation4], %s143
      %s146 = sshll.u32 [#allocation8], 4
      %s147 = int_to_ptr.vmem [resolvable:$true] %s146
      %149 = dma.vmem_to_hbm [thread:$0]  %s147, 128, %s3, [#allocation4]
    $region33: #{tpu_custom_call.1} parent=1 // pred_fallthru
      _
    // Predicated region
    $region34: #{tpu_custom_call.1} parent=1 // pred_check
      _
    $region35: #{tpu_custom_call.1} parent=1 // pred_check_branch
      %151 = sbr.rel (0) target = $region37
    $region36: #{tpu_custom_call.1} parent=1 // pred_region
      %152 = dma.done [#allocation4], 128
    $region37: #{tpu_custom_call.1} parent=1 // pred_fallthru
      _
    %153 = vsyncpa [#allocation3], 1
    %154 = vsyncpa [#allocation6], 1
    %155 = vsyncpa [#allocation4], 1

</llo_original>
